<compile_context>
chip_gen: v6e
topology: v6e:2x2x1
jax: 0.10.0
libtpu: 0.0.40
codegen_flags: <defaults>
</compile_context>

<pallas_src>
import jax
import jax.numpy as jnp
from jax.experimental import pallas as pl
from jax.experimental.pallas import tpu as pltpu


def attention_kernel(x_ref, ctx_ref,
                     w_aff_ref, b_aff_ref,
                     w_mlp_ref, b_mlp_ref,
                     out_ref):
    # x_ref:     (Bb, T, Hp)   target states
    # ctx_ref:   (Bb, S, Hp)   source states
    # w_aff_ref: (Hp, Hp)      affine weight, pre-transposed (h_t = x @ W_T + b)
    # b_aff_ref: (1, Hp)
    # w_mlp_ref: (2*Hp, Hp)    fused MLP weight for cat([c, x]), pre-transposed
    # b_mlp_ref: (1, Hp)
    # out_ref:   (Bb, T, Hp)
    Bb, T, Hp = x_ref.shape

    x = x_ref[...]        # keep native dtype: bf16 feeds the MXU directly
    ctx = ctx_ref[...]

    # --- affine projection on the flattened (Bb*T, Hp) slab (fills MXU M dim)
    x2 = x.reshape(Bb * T, Hp)
    h_t = (jnp.dot(x2, w_aff_ref[...], preferred_element_type=jnp.float32)
           + b_aff_ref[...].astype(jnp.float32))
    h_t3 = h_t.reshape(Bb, T, Hp).astype(ctx.dtype)

    # --- scores: batched contraction over hidden dim (no explicit transpose)
    scores = jnp.einsum('btd,bsd->bts', h_t3, ctx,
                        preferred_element_type=jnp.float32)        # (Bb, T, S)

    # --- softmax over the source dim, f32 math, EUP reciprocal
    m = jnp.max(scores, axis=-1, keepdims=True)
    e = jnp.exp(scores - m)
    inv_l = pl.reciprocal(jnp.sum(e, axis=-1, keepdims=True), approx=True)
    align = e * inv_l

    # --- context vector c = alignment @ context
    c = jnp.einsum('bts,bsd->btd', align.astype(ctx.dtype), ctx,
                   preferred_element_type=jnp.float32)             # (Bb, T, Hp)

    # --- fused output MLP: tanh([c, x] @ W_mlp^T + b), single K=2*Hp MXU op
    cat = jnp.concatenate(
        [c.reshape(Bb * T, Hp).astype(x.dtype), x2], axis=-1)      # (Bb*T, 2*Hp)
    y = (jnp.dot(cat, w_mlp_ref[...], preferred_element_type=jnp.float32)
         + b_mlp_ref[...].astype(jnp.float32))
    out_ref[...] = jnp.tanh(y).reshape(Bb, T, Hp).astype(out_ref.dtype)


def _pick_batch_block(B, T, target_rows=256):
    """Largest divisor of B with batch_block*T <= target_rows (>= 1)."""
    best = 1
    for bb in range(1, B + 1):
        if B % bb == 0 and bb * T <= max(target_rows, T):
            best = bb
    return best


def attention_forward(inp, ctx, w_aff, b_aff, w_mlp, b_mlp, *, batch_block=None):
    """inp: (B, T, H), ctx: (B, S, H)
       w_aff: (H, H), b_aff: (H,)    -- nn.Linear(hidden, hidden)
       w_mlp: (H, 2H), b_mlp: (H,)   -- nn.Linear(2*hidden, hidden)
       returns: (B, T, H)
    """
    B, T, H = inp.shape
    _, S, _ = ctx.shape

    # Pad hidden to a multiple of 128: lane-dense weights/activations/stores.
    Hp = ((H + 127) // 128) * 128
    ph = Hp - H
    if ph:
        inp_p = jnp.pad(inp, ((0, 0), (0, 0), (0, ph)))
        ctx_p = jnp.pad(ctx, ((0, 0), (0, 0), (0, ph)))
    else:
        inp_p, ctx_p = inp, ctx

    # nn.Linear: y = x @ W.T + b  ->  pre-transpose; zero-pad extra rows/cols.
    w_aff_t = jnp.pad(w_aff.T, ((0, ph), (0, ph)))                 # (Hp, Hp)
    b_aff_p = jnp.pad(b_aff, (0, ph)).reshape(1, Hp)
    w_c_t = jnp.pad(w_mlp[:, :H].T, ((0, ph), (0, ph)))            # acts on c
    w_x_t = jnp.pad(w_mlp[:, H:].T, ((0, ph), (0, ph)))            # acts on input
    w_mlp_t = jnp.concatenate([w_c_t, w_x_t], axis=0)              # (2*Hp, Hp)
    b_mlp_p = jnp.pad(b_mlp, (0, ph)).reshape(1, Hp)

    if batch_block is None:
        batch_block = _pick_batch_block(B, T)
    Bb = batch_block
    grid = (B // Bb,)

    # Advisory cost estimate for XLA scheduling around the custom call.
    itemsize = jnp.dtype(inp.dtype).itemsize
    flops = 2 * B * T * H * (H + S + S + 2 * H)
    transcendentals = B * T * (S + H + 1)          # exp + tanh + reciprocal
    bytes_accessed = itemsize * (inp.size + ctx.size + w_aff.size + b_aff.size
                                 + w_mlp.size + b_mlp.size + B * T * H)

    out_p = pl.pallas_call(
        attention_kernel,
        out_shape=jax.ShapeDtypeStruct((B, T, Hp), inp.dtype),
        grid=grid,
        in_specs=[
            pl.BlockSpec((Bb, T, Hp), lambda b: (b, 0, 0)),        # input
            pl.BlockSpec((Bb, S, Hp), lambda b: (b, 0, 0)),        # context
            pl.BlockSpec((Hp, Hp), lambda b: (0, 0)),              # w_aff^T
            pl.BlockSpec((1, Hp), lambda b: (0, 0)),               # b_aff
            pl.BlockSpec((2 * Hp, Hp), lambda b: (0, 0)),          # w_mlp^T (fused)
            pl.BlockSpec((1, Hp), lambda b: (0, 0)),               # b_mlp
        ],
        out_specs=pl.BlockSpec((Bb, T, Hp), lambda b: (b, 0, 0)),
        compiler_params=pltpu.CompilerParams(
            dimension_semantics=("parallel",),
            vmem_limit_bytes=64 * 1024 * 1024),
        cost_estimate=pl.CostEstimate(flops=flops,
                                      transcendentals=transcendentals,
                                      bytes_accessed=bytes_accessed),
    )(inp_p, ctx_p, w_aff_t, b_aff_p, w_mlp_t, b_mlp_p)

    return out_p[..., :H] if ph else out_p


def reference_forward(inp, ctx, w_aff, b_aff, w_mlp, b_mlp):
    """Pure-JAX reference replicating the PyTorch forward (softmax path)."""
    h_t = jnp.einsum('bth,oh->bto', inp, w_aff) + b_aff
    scores = jnp.einsum('bth,bsh->bts', h_t, ctx)
    align = jax.nn.softmax(scores, axis=2)
    c = jnp.einsum('bts,bsh->bth', align, ctx)
    cat = jnp.concatenate([c, inp], axis=2)
    return jnp.tanh(jnp.einsum('btk,ok->bto', cat, w_mlp) + b_mlp)


# TODO(synk): attn_func='sparsemax' branch is not implemented (module default
# used here is 'softmax').

if __name__ == "__main__":
    B, T, S, H = 2, 8, 8, 32

    key = jax.random.PRNGKey(0)
    k1, k2, k3, k4, k5, k6 = jax.random.split(key, 6)

    inp = jax.random.normal(k1, (B, T, H), dtype=jnp.float32)
    ctx = jax.random.normal(k2, (B, S, H), dtype=jnp.float32)

    # Deterministic parameter init (nn.Linear-shaped weights).
    w_aff = jax.random.normal(k3, (H, H), dtype=jnp.float32) * 0.1
    b_aff = jax.random.normal(k4, (H,), dtype=jnp.float32) * 0.1
    w_mlp = jax.random.normal(k5, (H, 2 * H), dtype=jnp.float32) * 0.1
    b_mlp = jax.random.normal(k6, (H,), dtype=jnp.float32) * 0.1

    out = attention_forward(inp, ctx, w_aff, b_aff, w_mlp, b_mlp)
    out = jax.block_until_ready(out)

    ref = reference_forward(inp, ctx, w_aff, b_aff, w_mlp, b_mlp)
    assert out.shape == (B, T, H)
    # approx=True EUP reciprocal loosens tolerance slightly vs the f32 reference
    assert jnp.allclose(out, ref, atol=2e-2, rtol=2e-2), "mismatch vs reference"

    print("KERNEL_OK")
</pallas_src>

<mosaic_0001>
module attributes {stable_mosaic.version = 11 : i64} {
  func.func @attention_kernel(%arg0: i32, %arg1: memref<2x8x128xf32, #tpu.memory_space<vmem>>, %arg2: memref<2x8x128xf32, #tpu.memory_space<vmem>>, %arg3: memref<128x128xf32, #tpu.memory_space<vmem>>, %arg4: memref<1x128xf32, #tpu.memory_space<vmem>>, %arg5: memref<256x128xf32, #tpu.memory_space<vmem>>, %arg6: memref<1x128xf32, #tpu.memory_space<vmem>>, %arg7: memref<2x8x128xf32, #tpu.memory_space<vmem>>) attributes {dimension_semantics = [#tpu.dimension_semantics<parallel>], iteration_bounds = array<i64: 1>, scalar_prefetch = 0 : i64, scratch_operands = 0 : i64, tpu.core_type = #tpu.core_type<tc>, window_params = [{transform_indices = @transform_0, window_bounds = array<i64: 2, 8, 128>}, {transform_indices = @transform_1, window_bounds = array<i64: 2, 8, 128>}, {pipeline_mode = #tpu.pipeline_mode<synchronous>, transform_indices = @transform_2, window_bounds = array<i64: 128, 128>}, {pipeline_mode = #tpu.pipeline_mode<synchronous>, transform_indices = @transform_3, window_bounds = array<i64: 1, 128>}, {pipeline_mode = #tpu.pipeline_mode<synchronous>, transform_indices = @transform_4, window_bounds = array<i64: 256, 128>}, {pipeline_mode = #tpu.pipeline_mode<synchronous>, transform_indices = @transform_5, window_bounds = array<i64: 1, 128>}, {transform_indices = @transform_6, window_bounds = array<i64: 2, 8, 128>}]} {
    %c0 = arith.constant 0 : index
    %c0_0 = arith.constant 0 : index
    %c0_1 = arith.constant 0 : index
    %0 = vector.load %arg1[%c0, %c0_0, %c0_1] : memref<2x8x128xf32, #tpu.memory_space<vmem>>, vector<2x8x128xf32>
    %c0_2 = arith.constant 0 : index
    %c0_3 = arith.constant 0 : index
    %c0_4 = arith.constant 0 : index
    %1 = vector.load %arg2[%c0_2, %c0_3, %c0_4] : memref<2x8x128xf32, #tpu.memory_space<vmem>>, vector<2x8x128xf32>
    %2 = vector.shape_cast %0 : vector<2x8x128xf32> to vector<16x128xf32>
    %c0_5 = arith.constant 0 : index
    %c0_6 = arith.constant 0 : index
    %3 = vector.load %arg3[%c0_5, %c0_6] : memref<128x128xf32, #tpu.memory_space<vmem>>, vector<128x128xf32>
    %cst = arith.constant dense<0.000000e+00> : vector<16x128xf32>
    %4 = tpu.matmul %2, %3, %cst {dimension_numbers = #tpu.dot_dimension_numbers<[1], [0], [0], [1], [0, 0, 1, 1], [], []>} : vector<16x128xf32>, vector<128x128xf32>, vector<16x128xf32> -> vector<16x128xf32>
    %c0_7 = arith.constant 0 : index
    %c0_8 = arith.constant 0 : index
    %5 = vector.load %arg4[%c0_7, %c0_8] : memref<1x128xf32, #tpu.memory_space<vmem>>, vector<1x128xf32>
    %6 = vector.broadcast %5 : vector<1x128xf32> to vector<16x128xf32>
    %7 = arith.addf %4, %6 : vector<16x128xf32>
    %8 = vector.shape_cast %7 : vector<16x128xf32> to vector<2x8x128xf32>
    "tpu.trace_start"() <{level = 10 : i32, message = "btd,bsd->bts"}> : () -> ()
    %cst_9 = arith.constant dense<0.000000e+00> : vector<2x8x8xf32>
    %9 = tpu.matmul %8, %1, %cst_9 {dimension_numbers = #tpu.dot_dimension_numbers<[2], [2], [1], [1], [0, 0, 0, 1, 1, 1], [0], [0]>} : vector<2x8x128xf32>, vector<2x8x128xf32>, vector<2x8x8xf32> -> vector<2x8x8xf32>
    "tpu.trace_stop"() : () -> ()
    %cst_10 = arith.constant dense<0xFF800000> : vector<2x8xf32>
    %10 = vector.multi_reduction <maximumf>, %9, %cst_10 [2] : vector<2x8x8xf32> to vector<2x8xf32>
    %11 = vector.shape_cast %10 : vector<2x8xf32> to vector<2x8x1xf32>
    %12 = vector.broadcast %11 : vector<2x8x1xf32> to vector<2x8x8xf32>
    %13 = arith.subf %9, %12 : vector<2x8x8xf32>
    %14 = math.exp %13 : vector<2x8x8xf32>
    %cst_11 = arith.constant dense<0.000000e+00> : vector<2x8xf32>
    %15 = vector.multi_reduction <add>, %14, %cst_11 [2] : vector<2x8x8xf32> to vector<2x8xf32>
    %16 = vector.shape_cast %15 : vector<2x8xf32> to vector<2x8x1xf32>
    %17 = tpu.reciprocal %16 {approx = true} : vector<2x8x1xf32> -> vector<2x8x1xf32>
    %18 = vector.broadcast %17 : vector<2x8x1xf32> to vector<2x8x8xf32>
    %19 = arith.mulf %14, %18 : vector<2x8x8xf32>
    "tpu.trace_start"() <{level = 10 : i32, message = "bts,bsd->btd"}> : () -> ()
    %cst_12 = arith.constant dense<0.000000e+00> : vector<2x8x128xf32>
    %20 = tpu.matmul %19, %1, %cst_12 {dimension_numbers = #tpu.dot_dimension_numbers<[2], [1], [1], [2], [0, 0, 0, 1, 1, 2], [0], [0]>} : vector<2x8x8xf32>, vector<2x8x128xf32>, vector<2x8x128xf32> -> vector<2x8x128xf32>
    "tpu.trace_stop"() : () -> ()
    %21 = vector.shape_cast %20 : vector<2x8x128xf32> to vector<16x128xf32>
    %22 = tpu.concatenate %21, %2 in 1 : vector<16x128xf32>, vector<16x128xf32> -> vector<16x256xf32>
    %c0_13 = arith.constant 0 : index
    %c0_14 = arith.constant 0 : index
    %23 = vector.load %arg5[%c0_13, %c0_14] : memref<256x128xf32, #tpu.memory_space<vmem>>, vector<256x128xf32>
    %cst_15 = arith.constant dense<0.000000e+00> : vector<16x128xf32>
    %24 = tpu.matmul %22, %23, %cst_15 {dimension_numbers = #tpu.dot_dimension_numbers<[1], [0], [0], [1], [0, 0, 1, 1], [], []>} : vector<16x256xf32>, vector<256x128xf32>, vector<16x128xf32> -> vector<16x128xf32>
    %c0_16 = arith.constant 0 : index
    %c0_17 = arith.constant 0 : index
    %25 = vector.load %arg6[%c0_16, %c0_17] : memref<1x128xf32, #tpu.memory_space<vmem>>, vector<1x128xf32>
    %26 = vector.broadcast %25 : vector<1x128xf32> to vector<16x128xf32>
    %27 = arith.addf %24, %26 : vector<16x128xf32>
    %28 = math.tanh %27 : vector<16x128xf32>
    %29 = vector.shape_cast %28 : vector<16x128xf32> to vector<2x8x128xf32>
    %c0_18 = arith.constant 0 : index
    %c0_19 = arith.constant 0 : index
    %c0_20 = arith.constant 0 : index
    %30 = vector.load %arg7[%c0_18, %c0_19, %c0_20] : memref<2x8x128xf32, #tpu.memory_space<vmem>>, vector<2x8x128xf32>
    tpu.vector_store %arg7[%c0_18, %c0_19, %c0_20], %29 {strides = array<i32>} : memref<2x8x128xf32, #tpu.memory_space<vmem>>, vector<2x8x128xf32>,
    return
  }
  func.func @transform_0(%arg0: i32) -> (i32, i32, i32) {
    %c0_i32 = arith.constant 0 : i32
    %c0_i32_0 = arith.constant 0 : i32
    %c0_i32_1 = arith.constant 0 : i32
    return %arg0, %c0_i32, %c0_i32_0 : i32, i32, i32
  }
  func.func @transform_1(%arg0: i32) -> (i32, i32, i32) {
    %c0_i32 = arith.constant 0 : i32
    %c0_i32_0 = arith.constant 0 : i32
    %c0_i32_1 = arith.constant 0 : i32
    return %arg0, %c0_i32, %c0_i32_0 : i32, i32, i32
  }
  func.func @transform_2(%arg0: i32) -> (i32, i32) {
    %c0_i32 = arith.constant 0 : i32
    %c0_i32_0 = arith.constant 0 : i32
    %c0_i32_1 = arith.constant 0 : i32
    return %c0_i32, %c0_i32_0 : i32, i32
  }
  func.func @transform_3(%arg0: i32) -> (i32, i32) {
    %c0_i32 = arith.constant 0 : i32
    %c0_i32_0 = arith.constant 0 : i32
    %c0_i32_1 = arith.constant 0 : i32
    return %c0_i32, %c0_i32_0 : i32, i32
  }
  func.func @transform_4(%arg0: i32) -> (i32, i32) {
    %c0_i32 = arith.constant 0 : i32
    %c0_i32_0 = arith.constant 0 : i32
    %c0_i32_1 = arith.constant 0 : i32
    return %c0_i32, %c0_i32_0 : i32, i32
  }
  func.func @transform_5(%arg0: i32) -> (i32, i32) {
    %c0_i32 = arith.constant 0 : i32
    %c0_i32_0 = arith.constant 0 : i32
    %c0_i32_1 = arith.constant 0 : i32
    return %c0_i32, %c0_i32_0 : i32, i32
  }
  func.func @transform_6(%arg0: i32) -> (i32, i32, i32) {
    %c0_i32 = arith.constant 0 : i32
    %c0_i32_0 = arith.constant 0 : i32
    %c0_i32_1 = arith.constant 0 : i32
    return %arg0, %c0_i32, %c0_i32_0 : i32, i32, i32
  }
}

</mosaic_0001>

<llo_original>
// kernel: tpu_custom_call.1
$region0: #{tpu_custom_call.1}
  #allocation0 [shape = 'u32[]', space=smem, size = 0x4, offset = 0x4, fixed_abs, tag = 'smem constant byte address 0x4 - core index']
  #allocation1 [shape = 'u32[144,128]{1,0:T(1,128)}', space=vmem, size = 0x12000, scoped, tag = 'internal scratch']
  %s0 = inlined_call_operand.hbm [shape: f32[2,8,128], index: 0, kind: input, shape index: {}]
  %s1 = inlined_call_operand.hbm [shape: f32[2,8,128], index: 1, kind: input, shape index: {}]
  %s2 = inlined_call_operand.hbm [shape: f32[128,128], index: 2, kind: input, shape index: {}]
  %s3 = inlined_call_operand.vmem [shape: f32[1,128], index: 3, kind: input, shape index: {}]
  %s4 = inlined_call_operand.hbm [shape: f32[256,128], index: 4, kind: input, shape index: {}]
  %s5 = inlined_call_operand.vmem [shape: f32[1,128], index: 5, kind: input, shape index: {}]
  %s6 = inlined_call_operand.hbm [shape: f32[2,8,128], index: 6, kind: output, shape index: {}]
  %s7 = sld [smem:[#allocation0]]
  $region50: #{tpu_custom_call.1} parent=0
    _
  %s9 = ssub.s32 1, %s7
  %s10 = scalar_select 0, %s9, %s7
  $region1: #{tpu_custom_call.1} parent=0
    #allocation2 [shape = 'u8[8192]{0}', space=vmem, size = 0x2000, scoped, tag = 'input window, operand 0, single buffered']
    #allocation3 [shape = 's32[1]{0}', space=sflag, size = 0x4, scoped, tag = 'scoped memory for tpu_custom_call.1']
    #allocation4 [shape = 's32[1]{0}', space=sflag, size = 0x4, scoped, tag = 'scoped memory for tpu_custom_call.1']
    #allocation5 [shape = 'u8[8192]{0}', space=vmem, size = 0x2000, scoped, tag = 'input window, operand 1, single buffered']
    #allocation6 [shape = 's32[1]{0}', space=sflag, size = 0x4, scoped, tag = 'scoped memory for tpu_custom_call.1']
    #allocation7 [shape = 'u8[65536]{0}', space=vmem, size = 0x10000, scoped, tag = 'input window, operand 2, single buffered']
    #allocation8 [shape = 'u8[131072]{0}', space=vmem, size = 0x20000, scoped, tag = 'input window, operand 4, single buffered']
    #allocation9 [shape = 's32[1]{0}', space=sflag, size = 0x4, scoped, tag = 'scoped memory for tpu_custom_call.1']
    #allocation10 [shape = 'u8[8192]{0}', space=vmem, size = 0x2000, scoped, tag = 'output window, operand 0, single buffered']
    %11 = vsyncpa [#allocation3], 0
    %12 = vsyncpa [#allocation6], 0
    %13 = vsyncpa [#allocation9], 0
    %14 = vsyncpa [#allocation4], 0
    // Predicated region
    $region2: #{tpu_custom_call.1} parent=1 // pred_check
      _
    $region3: #{tpu_custom_call.1} parent=1 // pred_check_branch
      %16 = sbr.rel (0) target = $region5
    $region4: #{tpu_custom_call.1} parent=1 // pred_region
      %s18 = ssub.s32 256, 256
      %19 = vsyncadd [#allocation3], %s18
      %s20 = sshll.u32 [#allocation2], 4
      %s21 = int_to_ptr.vmem [resolvable:$true] %s20
      %26 = dma.hbm_to_vmem [thread:$0]  %s0, 256, %s21, [#allocation3], 128, 128, 8
    $region5: #{tpu_custom_call.1} parent=1 // pred_fallthru
      _
    // Predicated region
    $region6: #{tpu_custom_call.1} parent=1 // pred_check
      _
    $region7: #{tpu_custom_call.1} parent=1 // pred_check_branch
      %28 = sbr.rel (0) target = $region9
    $region8: #{tpu_custom_call.1} parent=1 // pred_region
      %s30 = ssub.s32 256, 256
      %31 = vsyncadd [#allocation6], %s30
      %s32 = sshll.u32 [#allocation5], 4
      %s33 = int_to_ptr.vmem [resolvable:$true] %s32
      %38 = dma.hbm_to_vmem [thread:$0]  %s1, 256, %s33, [#allocation6], 128, 128, 8
    $region9: #{tpu_custom_call.1} parent=1 // pred_fallthru
      _
    // Predicated region
    $region10: #{tpu_custom_call.1} parent=1 // pred_check
      _
    $region11: #{tpu_custom_call.1} parent=1 // pred_check_branch
      %40 = sbr.rel (0) target = $region13
    $region12: #{tpu_custom_call.1} parent=1 // pred_region
      %s42 = ssub.s32 2048, 2048
      %43 = vsyncadd [#allocation6], %s42
      %s44 = sshll.u32 [#allocation7], 4
      %s45 = int_to_ptr.vmem [resolvable:$true] %s44
      %50 = dma.hbm_to_vmem [thread:$0]  %s2, 2048, %s45, [#allocation6], 128, 128, 8
    $region13: #{tpu_custom_call.1} parent=1 // pred_fallthru
      _
    // Predicated region
    $region14: #{tpu_custom_call.1} parent=1 // pred_check
      _
    $region15: #{tpu_custom_call.1} parent=1 // pred_check_branch
      %52 = sbr.rel (0) target = $region17
    $region16: #{tpu_custom_call.1} parent=1 // pred_region
      _
    $region17: #{tpu_custom_call.1} parent=1 // pred_fallthru
      _
    // Predicated region
    $region18: #{tpu_custom_call.1} parent=1 // pred_check
      _
    $region19: #{tpu_custom_call.1} parent=1 // pred_check_branch
      %54 = sbr.rel (0) target = $region21
    $region20: #{tpu_custom_call.1} parent=1 // pred_region
      %s56 = ssub.s32 4096, 4096
      %57 = vsyncadd [#allocation9], %s56
      %s58 = sshll.u32 [#allocation8], 4
      %s59 = int_to_ptr.vmem [resolvable:$true] %s58
      %64 = dma.hbm_to_vmem [thread:$0]  %s4, 4096, %s59, [#allocation9], 128, 128, 8
    $region21: #{tpu_custom_call.1} parent=1 // pred_fallthru
      _
    // Predicated region
    $region22: #{tpu_custom_call.1} parent=1 // pred_check
      _
    $region23: #{tpu_custom_call.1} parent=1 // pred_check_branch
      %66 = sbr.rel (0) target = $region25
    $region24: #{tpu_custom_call.1} parent=1 // pred_region
      _
    $region25: #{tpu_custom_call.1} parent=1 // pred_fallthru
      _
    // Predicated region
    $region26: #{tpu_custom_call.1} parent=1 // pred_check
      _
    $region27: #{tpu_custom_call.1} parent=1 // pred_check_branch
      %68 = sbr.rel (0) target = $region29
    $region28: #{tpu_custom_call.1} parent=1 // pred_region
      %69 = dma.done [#allocation3], 256
    $region29: #{tpu_custom_call.1} parent=1 // pred_fallthru
      _
    // Predicated region
    $region30: #{tpu_custom_call.1} parent=1 // pred_check
      _
    $region31: #{tpu_custom_call.1} parent=1 // pred_check_branch
      %71 = sbr.rel (0) target = $region33
    $region32: #{tpu_custom_call.1} parent=1 // pred_region
      %72 = dma.done [#allocation6], 256
    $region33: #{tpu_custom_call.1} parent=1 // pred_fallthru
      _
    // Predicated region
    $region34: #{tpu_custom_call.1} parent=1 // pred_check
      _
    $region35: #{tpu_custom_call.1} parent=1 // pred_check_branch
      %74 = sbr.rel (0) target = $region37
    $region36: #{tpu_custom_call.1} parent=1 // pred_region
      %75 = dma.done [#allocation6], 2048
    $region37: #{tpu_custom_call.1} parent=1 // pred_fallthru
      _
    // Predicated region
    $region38: #{tpu_custom_call.1} parent=1 // pred_check
      _
    $region39: #{tpu_custom_call.1} parent=1 // pred_check_branch
      %77 = sbr.rel (0) target = $region41
    $region40: #{tpu_custom_call.1} parent=1 // pred_region
      %78 = dma.done [#allocation9], 4096
    $region41: #{tpu_custom_call.1} parent=1 // pred_fallthru
      _
    %v79 = vld [vmem:[#allocation2] sm:$0xff]
    %v80 = vld [vmem:[#allocation2 + $0x8] sm:$0xff]
    %v81 = vld [vmem:[#allocation5] sm:$0xff]
    %v82 = vld [vmem:[#allocation5 + $0x8] sm:$0xff]
    %v83 = vld [vmem:[#allocation7] sm:$0xff]
    %v84 = vld [vmem:[#allocation7 + $0x8] sm:$0xff]
    %v85 = vld [vmem:[#allocation7 + $0x10] sm:$0xff]
    %v86 = vld [vmem:[#allocation7 + $0x18] sm:$0xff]
    %v87 = vld [vmem:[#allocation7 + $0x20] sm:$0xff]
    %v88 = vld [vmem:[#allocation7 + $0x28] sm:$0xff]
    %v89 = vld [vmem:[#allocation7 + $0x30] sm:$0xff]
    %v90 = vld [vmem:[#allocation7 + $0x38] sm:$0xff]
    %v91 = vld [vmem:[#allocation7 + $0x40] sm:$0xff]
    %v92 = vld [vmem:[#allocation7 + $0x48] sm:$0xff]
    %v93 = vld [vmem:[#allocation7 + $0x50] sm:$0xff]
    %v94 = vld [vmem:[#allocation7 + $0x58] sm:$0xff]
    %v95 = vld [vmem:[#allocation7 + $0x60] sm:$0xff]
    %v96 = vld [vmem:[#allocation7 + $0x68] sm:$0xff]
    %v97 = vld [vmem:[#allocation7 + $0x70] sm:$0xff]
    %v98 = vld [vmem:[#allocation7 + $0x78] sm:$0xff]
    %v99 = vld [vmem:[%s3] sm:$0x1]
    %v101 = vlaneseq
    %v102 = vshrl.u32 %v101, 7
    %v103 = vsub.s32 0, %v102
    %v104 = vrot.slane %v99, %v103
    %106 = vmatprep.subr.mxu0 0.0
    %107 = vmatpush1.msra.mxu0 %v98
    %108 = vmatprep.subr.mxu0 0.0
    %109 = vmatpush1.msra.mxu0 %v97
    %110 = vmatprep.subr.mxu0 0.0
    %111 = vmatpush1.msra.mxu0 %v96
    %112 = vmatprep.subr.mxu0 0.0
    %113 = vmatpush1.msra.mxu0 %v95
    %114 = vmatprep.subr.mxu0 0.0
    %115 = vmatpush1.msra.mxu0 %v94
    %116 = vmatprep.subr.mxu0 0.0
    %117 = vmatpush1.msra.mxu0 %v93
    %118 = vmatprep.subr.mxu0 0.0
    %119 = vmatpush1.msra.mxu0 %v92
    %120 = vmatprep.subr.mxu0 0.0
    %121 = vmatpush1.msra.mxu0 %v91
    %122 = vmatprep.subr.mxu0 0.0
    %123 = vmatpush1.msra.mxu0 %v90
    %124 = vmatprep.subr.mxu0 0.0
    %125 = vmatpush1.msra.mxu0 %v89
    %126 = vmatprep.subr.mxu0 0.0
    %127 = vmatpush1.msra.mxu0 %v88
    %128 = vmatprep.subr.mxu0 0.0
    %129 = vmatpush1.msra.mxu0 %v87
    %130 = vmatprep.subr.mxu0 0.0
    %131 = vmatpush1.msra.mxu0 %v86
    %132 = vmatprep.subr.mxu0 0.0
    %133 = vmatpush1.msra.mxu0 %v85
    %134 = vmatprep.subr.mxu0 0.0
    %135 = vmatpush1.msra.mxu0 %v84
    %136 = vmatprep.subr.mxu0 0.0
    %137 = vmatpush1.msra.mxu0 %v83
    %138 = vmatprep.subr.mxu0 0.0
    %139 = vmatpush2.msra.mxu0 0.0
    %140 = vmatprep.subr.mxu0 0.0
    %141 = vmatpush2.msra.mxu0 0.0
    %142 = vmatprep.subr.mxu0 0.0
    %143 = vmatpush2.msra.mxu0 0.0
    %144 = vmatprep.subr.mxu0 0.0
    %145 = vmatpush2.msra.mxu0 0.0
    %146 = vmatprep.subr.mxu0 0.0
    %147 = vmatpush2.msra.mxu0 0.0
    %148 = vmatprep.subr.mxu0 0.0
    %149 = vmatpush2.msra.mxu0 0.0
    %150 = vmatprep.subr.mxu0 0.0
    %151 = vmatpush2.msra.mxu0 0.0
    %152 = vmatprep.subr.mxu0 0.0
    %153 = vmatpush2.msra.mxu0 0.0
    %154 = vmatprep.subr.mxu0 0.0
    %155 = vmatpush2.msra.mxu0 0.0
    %156 = vmatprep.subr.mxu0 0.0
    %157 = vmatpush2.msra.mxu0 0.0
    %158 = vmatprep.subr.mxu0 0.0
    %159 = vmatpush2.msra.mxu0 0.0
    %160 = vmatprep.subr.mxu0 0.0
    %161 = vmatpush2.msra.mxu0 0.0
    %162 = vmatprep.subr.mxu0 0.0
    %163 = vmatpush2.msra.mxu0 0.0
    %164 = vmatprep.subr.mxu0 0.0
    %165 = vmatpush2.msra.mxu0 0.0
    %166 = vmatprep.subr.mxu0 0.0
    %167 = vmatpush2.msra.mxu0 0.0
    %168 = vmatprep.subr.mxu0 0.0
    %169 = vmatpush2.msra.mxu0 0.0
    %170 = vmatprep.mubr.f32.mxu0 0.0
    %171 = vmatmul.mubr.f32.gmra.mxu0 %v79
    %v172 = vpop.f32.mrf.mxu0
    %v173 = vadd.f32 %v104, %v172
    %v174 = vpop.f32.mrf.mxu0
    %175 = vmatprep.mubr.f32.mxu0 0.0
    %176 = vmatmul.mubr.f32.gmra.mxu0 %v80
    %v177 = vpop.f32.mrf.mxu0
    %v178 = vadd.f32 %v104, %v177
    %v179 = vpop.f32.mrf.mxu0
    %180 = vdwg.mxu0
    %181 = vmatprep.subr.mxu0 0.0
    %182 = vmatpush1.xpose.msra.mxu0 0.0
    %183 = vmatprep.subr.mxu0 0.0
    %184 = vmatpush1.xpose.msra.mxu0 0.0
    %185 = vmatprep.subr.mxu0 0.0
    %186 = vmatpush1.xpose.msra.mxu0 0.0
    %187 = vmatprep.subr.mxu0 0.0
    %188 = vmatpush1.xpose.msra.mxu0 0.0
    %189 = vmatprep.subr.mxu0 0.0
    %190 = vmatpush1.xpose.msra.mxu0 0.0
    %191 = vmatprep.subr.mxu0 0.0
    %192 = vmatpush1.xpose.msra.mxu0 0.0
    %193 = vmatprep.subr.mxu0 0.0
    %194 = vmatpush1.xpose.msra.mxu0 0.0
    %195 = vmatprep.subr.mxu0 0.0
    %196 = vmatpush1.xpose.msra.mxu0 0.0
    %197 = vmatprep.subr.mxu0 0.0
    %198 = vmatpush1.xpose.msra.mxu0 0.0
    %199 = vmatprep.subr.mxu0 0.0
    %200 = vmatpush1.xpose.msra.mxu0 0.0
    %201 = vmatprep.subr.mxu0 0.0
    %202 = vmatpush1.xpose.msra.mxu0 0.0
    %203 = vmatprep.subr.mxu0 0.0
    %204 = vmatpush1.xpose.msra.mxu0 0.0
    %205 = vmatprep.subr.mxu0 0.0
    %206 = vmatpush1.xpose.msra.mxu0 0.0
    %207 = vmatprep.subr.mxu0 0.0
    %208 = vmatpush1.xpose.msra.mxu0 0.0
    %209 = vmatprep.subr.mxu0 0.0
    %210 = vmatpush1.xpose.msra.mxu0 0.0
    %211 = vmatprep.subr.mxu0 0.0
    %212 = vmatpush1.xpose.msra.mxu0 %v81
    %213 = vmatprep.subr.mxu0 0.0
    %214 = vmatpush2.xpose.msra.mxu0 0.0
    %215 = vmatprep.subr.mxu0 0.0
    %216 = vmatpush2.xpose.msra.mxu0 0.0
    %217 = vmatprep.subr.mxu0 0.0
    %218 = vmatpush2.xpose.msra.mxu0 0.0
    %219 = vmatprep.subr.mxu0 0.0
    %220 = vmatpush2.xpose.msra.mxu0 0.0
    %221 = vmatprep.subr.mxu0 0.0
    %222 = vmatpush2.xpose.msra.mxu0 0.0
    %223 = vmatprep.subr.mxu0 0.0
    %224 = vmatpush2.xpose.msra.mxu0 0.0
    %225 = vmatprep.subr.mxu0 0.0
    %226 = vmatpush2.xpose.msra.mxu0 0.0
    %227 = vmatprep.subr.mxu0 0.0
    %228 = vmatpush2.xpose.msra.mxu0 0.0
    %229 = vmatprep.subr.mxu0 0.0
    %230 = vmatpush2.xpose.msra.mxu0 0.0
    %231 = vmatprep.subr.mxu0 0.0
    %232 = vmatpush2.xpose.msra.mxu0 0.0
    %233 = vmatprep.subr.mxu0 0.0
    %234 = vmatpush2.xpose.msra.mxu0 0.0
    %235 = vmatprep.subr.mxu0 0.0
    %236 = vmatpush2.xpose.msra.mxu0 0.0
    %237 = vmatprep.subr.mxu0 0.0
    %238 = vmatpush2.xpose.msra.mxu0 0.0
    %239 = vmatprep.subr.mxu0 0.0
    %240 = vmatpush2.xpose.msra.mxu0 0.0
    %241 = vmatprep.subr.mxu0 0.0
    %242 = vmatpush2.xpose.msra.mxu0 0.0
    %243 = vmatprep.subr.mxu0 0.0
    %244 = vmatpush2.xpose.msra.mxu0 0.0
    %245 = vmatprep.mubr.f32.mxu0 0.0
    %246 = vmatmul.mubr.f32.gmra.mxu0 %v173
    %v247 = vpop.f32.mrf.mxu0
    %v248 = vadd.f32 0.0, %v247
    %v249 = vpop.f32.mrf.mxu0
    %250 = vdwg.mxu0
    %251 = vmatprep.subr.mxu0 0.0
    %252 = vmatpush1.xpose.msra.mxu0 0.0
    %253 = vmatprep.subr.mxu0 0.0
    %254 = vmatpush1.xpose.msra.mxu0 0.0
    %255 = vmatprep.subr.mxu0 0.0
    %256 = vmatpush1.xpose.msra.mxu0 0.0
    %257 = vmatprep.subr.mxu0 0.0
    %258 = vmatpush1.xpose.msra.mxu0 0.0
    %259 = vmatprep.subr.mxu0 0.0
    %260 = vmatpush1.xpose.msra.mxu0 0.0
    %261 = vmatprep.subr.mxu0 0.0
    %262 = vmatpush1.xpose.msra.mxu0 0.0
    %263 = vmatprep.subr.mxu0 0.0
    %264 = vmatpush1.xpose.msra.mxu0 0.0
    %265 = vmatprep.subr.mxu0 0.0
    %266 = vmatpush1.xpose.msra.mxu0 0.0
    %267 = vmatprep.subr.mxu0 0.0
    %268 = vmatpush1.xpose.msra.mxu0 0.0
    %269 = vmatprep.subr.mxu0 0.0
    %270 = vmatpush1.xpose.msra.mxu0 0.0
    %271 = vmatprep.subr.mxu0 0.0
    %272 = vmatpush1.xpose.msra.mxu0 0.0
    %273 = vmatprep.subr.mxu0 0.0
    %274 = vmatpush1.xpose.msra.mxu0 0.0
    %275 = vmatprep.subr.mxu0 0.0
    %276 = vmatpush1.xpose.msra.mxu0 0.0
    %277 = vmatprep.subr.mxu0 0.0
    %278 = vmatpush1.xpose.msra.mxu0 0.0
    %279 = vmatprep.subr.mxu0 0.0
    %280 = vmatpush1.xpose.msra.mxu0 0.0
    %281 = vmatprep.subr.mxu0 0.0
    %282 = vmatpush1.xpose.msra.mxu0 %v82
    %283 = vmatprep.subr.mxu0 0.0
    %284 = vmatpush2.xpose.msra.mxu0 0.0
    %285 = vmatprep.subr.mxu0 0.0
    %286 = vmatpush2.xpose.msra.mxu0 0.0
    %287 = vmatprep.subr.mxu0 0.0
    %288 = vmatpush2.xpose.msra.mxu0 0.0
    %289 = vmatprep.subr.mxu0 0.0
    %290 = vmatpush2.xpose.msra.mxu0 0.0
    %291 = vmatprep.subr.mxu0 0.0
    %292 = vmatpush2.xpose.msra.mxu0 0.0
    %293 = vmatprep.subr.mxu0 0.0
    %294 = vmatpush2.xpose.msra.mxu0 0.0
    %295 = vmatprep.subr.mxu0 0.0
    %296 = vmatpush2.xpose.msra.mxu0 0.0
    %297 = vmatprep.subr.mxu0 0.0
    %298 = vmatpush2.xpose.msra.mxu0 0.0
    %299 = vmatprep.subr.mxu0 0.0
    %300 = vmatpush2.xpose.msra.mxu0 0.0
    %301 = vmatprep.subr.mxu0 0.0
    %302 = vmatpush2.xpose.msra.mxu0 0.0
    %303 = vmatprep.subr.mxu0 0.0
    %304 = vmatpush2.xpose.msra.mxu0 0.0
    %305 = vmatprep.subr.mxu0 0.0
    %306 = vmatpush2.xpose.msra.mxu0 0.0
    %307 = vmatprep.subr.mxu0 0.0
    %308 = vmatpush2.xpose.msra.mxu0 0.0
    %309 = vmatprep.subr.mxu0 0.0
    %310 = vmatpush2.xpose.msra.mxu0 0.0
    %311 = vmatprep.subr.mxu0 0.0
    %312 = vmatpush2.xpose.msra.mxu0 0.0
    %313 = vmatprep.subr.mxu0 0.0
    %314 = vmatpush2.xpose.msra.mxu0 0.0
    %315 = vmatprep.mubr.f32.mxu0 0.0
    %316 = vmatmul.mubr.f32.gmra.mxu0 %v178
    %v317 = vpop.f32.mrf.mxu0
    %v318 = vadd.f32 0.0, %v317
    %v319 = vpop.f32.mrf.mxu0
    %320 = vdwg.mxu0
    %vm321 = vcmask 64512
    %v322 = vsel %vm321, %v248, -inf
    %323 = vmax.xlane.f32.xlu0 %v322
    %v324 = vpop.xlane.xlu0 %323
    %v325 = vsel %vm321, %v318, -inf
    %326 = vmax.xlane.f32.xlu0 %v325
    %v327 = vpop.xlane.xlu0 %326
    %v328 = vsub.f32 %v248, %v324
    %v329 = vsub.f32 %v318, %v327
    %v330 = vmul.f32 %v328, 1.442695
    %v331 = vpow.pop %v330
    %v332 = vmul.f32 %v329, 1.442695
    %v333 = vpow.pop %v332
    %v334 = vsel %vm321, %v331, 0.0
    %335 = vadd.xlane.f32.xlu0 %v334
    %v336 = vpop.xlane.xlu0 %335
    %v337 = vsel %vm321, %v333, 0.0
    %338 = vadd.xlane.f32.xlu0 %v337
    %v339 = vpop.xlane.xlu0 %338
    %v340 = vrcp.pop %v336
    %v341 = vrcp.pop %v339
    %v342 = vmul.f32 %v331, %v340
    %v343 = vmul.f32 %v333, %v341
    %v345 = vsel %vm321, %v342, 0
    %347 = vmatprep.subr.mxu0 0.0
    %348 = vmatpush1.msra.mxu0 0.0
    %349 = vmatprep.subr.mxu0 0.0
    %350 = vmatpush1.msra.mxu0 0.0
    %351 = vmatprep.subr.mxu0 0.0
    %352 = vmatpush1.msra.mxu0 0.0
    %353 = vmatprep.subr.mxu0 0.0
    %354 = vmatpush1.msra.mxu0 0.0
    %355 = vmatprep.subr.mxu0 0.0
    %356 = vmatpush1.msra.mxu0 0.0
    %357 = vmatprep.subr.mxu0 0.0
    %358 = vmatpush1.msra.mxu0 0.0
    %359 = vmatprep.subr.mxu0 0.0
    %360 = vmatpush1.msra.mxu0 0.0
    %361 = vmatprep.subr.mxu0 0.0
    %362 = vmatpush1.msra.mxu0 0.0
    %363 = vmatprep.subr.mxu0 0.0
    %364 = vmatpush1.msra.mxu0 0.0
    %365 = vmatprep.subr.mxu0 0.0
    %366 = vmatpush1.msra.mxu0 0.0
    %367 = vmatprep.subr.mxu0 0.0
    %368 = vmatpush1.msra.mxu0 0.0
    %369 = vmatprep.subr.mxu0 0.0
    %370 = vmatpush1.msra.mxu0 0.0
    %371 = vmatprep.subr.mxu0 0.0
    %372 = vmatpush1.msra.mxu0 0.0
    %373 = vmatprep.subr.mxu0 0.0
    %374 = vmatpush1.msra.mxu0 0.0
    %375 = vmatprep.subr.mxu0 0.0
    %376 = vmatpush1.msra.mxu0 0.0
    %377 = vmatprep.subr.mxu0 0.0
    %378 = vmatpush1.msra.mxu0 %v81
    %379 = vmatprep.subr.mxu0 0.0
    %380 = vmatpush2.msra.mxu0 0.0
    %381 = vmatprep.subr.mxu0 0.0
    %382 = vmatpush2.msra.mxu0 0.0
    %383 = vmatprep.subr.mxu0 0.0
    %384 = vmatpush2.msra.mxu0 0.0
    %385 = vmatprep.subr.mxu0 0.0
    %386 = vmatpush2.msra.mxu0 0.0
    %387 = vmatprep.subr.mxu0 0.0
    %388 = vmatpush2.msra.mxu0 0.0
    %389 = vmatprep.subr.mxu0 0.0
    %390 = vmatpush2.msra.mxu0 0.0
    %391 = vmatprep.subr.mxu0 0.0
    %392 = vmatpush2.msra.mxu0 0.0
    %393 = vmatprep.subr.mxu0 0.0
    %394 = vmatpush2.msra.mxu0 0.0
    %395 = vmatprep.subr.mxu0 0.0
    %396 = vmatpush2.msra.mxu0 0.0
    %397 = vmatprep.subr.mxu0 0.0
    %398 = vmatpush2.msra.mxu0 0.0
    %399 = vmatprep.subr.mxu0 0.0
    %400 = vmatpush2.msra.mxu0 0.0
    %401 = vmatprep.subr.mxu0 0.0
    %402 = vmatpush2.msra.mxu0 0.0
    %403 = vmatprep.subr.mxu0 0.0
    %404 = vmatpush2.msra.mxu0 0.0
    %405 = vmatprep.subr.mxu0 0.0
    %406 = vmatpush2.msra.mxu0 0.0
    %407 = vmatprep.subr.mxu0 0.0
    %408 = vmatpush2.msra.mxu0 0.0
    %409 = vmatprep.subr.mxu0 0.0
    %410 = vmatpush2.msra.mxu0 0.0
    %411 = vmatprep.mubr.f32.mxu0 0.0
    %412 = vmatmul.mubr.f32.gmra.mxu0 %v345
    %v413 = vpop.f32.mrf.mxu0
    %v414 = vadd.f32 0.0, %v413
    %v415 = vpop.f32.mrf.mxu0
    %416 = vdwg.mxu0
    %v418 = vsel %vm321, %v343, 0
    %420 = vmatprep.subr.mxu0 0.0
    %421 = vmatpush1.msra.mxu0 0.0
    %422 = vmatprep.subr.mxu0 0.0
    %423 = vmatpush1.msra.mxu0 0.0
    %424 = vmatprep.subr.mxu0 0.0
    %425 = vmatpush1.msra.mxu0 0.0
    %426 = vmatprep.subr.mxu0 0.0
    %427 = vmatpush1.msra.mxu0 0.0
    %428 = vmatprep.subr.mxu0 0.0
    %429 = vmatpush1.msra.mxu0 0.0
    %430 = vmatprep.subr.mxu0 0.0
    %431 = vmatpush1.msra.mxu0 0.0
    %432 = vmatprep.subr.mxu0 0.0
    %433 = vmatpush1.msra.mxu0 0.0
    %434 = vmatprep.subr.mxu0 0.0
    %435 = vmatpush1.msra.mxu0 0.0
    %436 = vmatprep.subr.mxu0 0.0
    %437 = vmatpush1.msra.mxu0 0.0
    %438 = vmatprep.subr.mxu0 0.0
    %439 = vmatpush1.msra.mxu0 0.0
    %440 = vmatprep.subr.mxu0 0.0
    %441 = vmatpush1.msra.mxu0 0.0
    %442 = vmatprep.subr.mxu0 0.0
    %443 = vmatpush1.msra.mxu0 0.0
    %444 = vmatprep.subr.mxu0 0.0
    %445 = vmatpush1.msra.mxu0 0.0
    %446 = vmatprep.subr.mxu0 0.0
    %447 = vmatpush1.msra.mxu0 0.0
    %448 = vmatprep.subr.mxu0 0.0
    %449 = vmatpush1.msra.mxu0 0.0
    %450 = vmatprep.subr.mxu0 0.0
    %451 = vmatpush1.msra.mxu0 %v82
    %452 = vmatprep.subr.mxu0 0.0
    %453 = vmatpush2.msra.mxu0 0.0
    %454 = vmatprep.subr.mxu0 0.0
    %455 = vmatpush2.msra.mxu0 0.0
    %456 = vmatprep.subr.mxu0 0.0
    %457 = vmatpush2.msra.mxu0 0.0
    %458 = vmatprep.subr.mxu0 0.0
    %459 = vmatpush2.msra.mxu0 0.0
    %460 = vmatprep.subr.mxu0 0.0
    %461 = vmatpush2.msra.mxu0 0.0
    %462 = vmatprep.subr.mxu0 0.0
    %463 = vmatpush2.msra.mxu0 0.0
    %464 = vmatprep.subr.mxu0 0.0
    %465 = vmatpush2.msra.mxu0 0.0
    %466 = vmatprep.subr.mxu0 0.0
    %467 = vmatpush2.msra.mxu0 0.0
    %468 = vmatprep.subr.mxu0 0.0
    %469 = vmatpush2.msra.mxu0 0.0
    %470 = vmatprep.subr.mxu0 0.0
    %471 = vmatpush2.msra.mxu0 0.0
    %472 = vmatprep.subr.mxu0 0.0
    %473 = vmatpush2.msra.mxu0 0.0
    %474 = vmatprep.subr.mxu0 0.0
    %475 = vmatpush2.msra.mxu0 0.0
    %476 = vmatprep.subr.mxu0 0.0
    %477 = vmatpush2.msra.mxu0 0.0
    %478 = vmatprep.subr.mxu0 0.0
    %479 = vmatpush2.msra.mxu0 0.0
    %480 = vmatprep.subr.mxu0 0.0
    %481 = vmatpush2.msra.mxu0 0.0
    %482 = vmatprep.subr.mxu0 0.0
    %483 = vmatpush2.msra.mxu0 0.0
    %484 = vmatprep.mubr.f32.mxu0 0.0
    %485 = vmatmul.mubr.f32.gmra.mxu0 %v418
    %v486 = vpop.f32.mrf.mxu0
    %v487 = vadd.f32 0.0, %v486
    %v488 = vpop.f32.mrf.mxu0
    %489 = vdwg.mxu0
    %v490 = vld [vmem:[#allocation8] sm:$0xff]
    %v491 = vld [vmem:[#allocation8 + $0x8] sm:$0xff]
    %v492 = vld [vmem:[#allocation8 + $0x10] sm:$0xff]
    %v493 = vld [vmem:[#allocation8 + $0x18] sm:$0xff]
    %v494 = vld [vmem:[#allocation8 + $0x20] sm:$0xff]
    %v495 = vld [vmem:[#allocation8 + $0x28] sm:$0xff]
    %v496 = vld [vmem:[#allocation8 + $0x30] sm:$0xff]
    %v497 = vld [vmem:[#allocation8 + $0x38] sm:$0xff]
    %v498 = vld [vmem:[#allocation8 + $0x40] sm:$0xff]
    %v499 = vld [vmem:[#allocation8 + $0x48] sm:$0xff]
    %v500 = vld [vmem:[#allocation8 + $0x50] sm:$0xff]
    %v501 = vld [vmem:[#allocation8 + $0x58] sm:$0xff]
    %v502 = vld [vmem:[#allocation8 + $0x60] sm:$0xff]
    %v503 = vld [vmem:[#allocation8 + $0x68] sm:$0xff]
    %v504 = vld [vmem:[#allocation8 + $0x70] sm:$0xff]
    %v505 = vld [vmem:[#allocation8 + $0x78] sm:$0xff]
    %v506 = vld [vmem:[#allocation8 + $0x80] sm:$0xff]
    %v507 = vld [vmem:[#allocation8 + $0x88] sm:$0xff]
    %v508 = vld [vmem:[#allocation8 + $0x90] sm:$0xff]
    %v509 = vld [vmem:[#allocation8 + $0x98] sm:$0xff]
    %v510 = vld [vmem:[#allocation8 + $0xa0] sm:$0xff]
    %v511 = vld [vmem:[#allocation8 + $0xa8] sm:$0xff]
    %v512 = vld [vmem:[#allocation8 + $0xb0] sm:$0xff]
    %v513 = vld [vmem:[#allocation8 + $0xb8] sm:$0xff]
    %v514 = vld [vmem:[#allocation8 + $0xc0] sm:$0xff]
    %v515 = vld [vmem:[#allocation8 + $0xc8] sm:$0xff]
    %v516 = vld [vmem:[#allocation8 + $0xd0] sm:$0xff]
    %v517 = vld [vmem:[#allocation8 + $0xd8] sm:$0xff]
    %v518 = vld [vmem:[#allocation8 + $0xe0] sm:$0xff]
    %v519 = vld [vmem:[#allocation8 + $0xe8] sm:$0xff]
    %v520 = vld [vmem:[#allocation8 + $0xf0] sm:$0xff]
    %v521 = vld [vmem:[#allocation8 + $0xf8] sm:$0xff]
    %v522 = vld [vmem:[%s5] sm:$0x1]
    %v524 = vlaneseq
    %v525 = vshrl.u32 %v524, 7
    %v526 = vsub.s32 0, %v525
    %v527 = vrot.slane %v522, %v526
    %529 = vmatprep.subr.mxu0 0.0
    %530 = vmatpush1.msra.mxu0 %v505
    %531 = vmatprep.subr.mxu0 0.0
    %532 = vmatpush1.msra.mxu0 %v504
    %533 = vmatprep.subr.mxu0 0.0
    %534 = vmatpush1.msra.mxu0 %v503
    %535 = vmatprep.subr.mxu0 0.0
    %536 = vmatpush1.msra.mxu0 %v502
    %537 = vmatprep.subr.mxu0 0.0
    %538 = vmatpush1.msra.mxu0 %v501
    %539 = vmatprep.subr.mxu0 0.0
    %540 = vmatpush1.msra.mxu0 %v500
    %541 = vmatprep.subr.mxu0 0.0
    %542 = vmatpush1.msra.mxu0 %v499
    %543 = vmatprep.subr.mxu0 0.0
    %544 = vmatpush1.msra.mxu0 %v498
    %545 = vmatprep.subr.mxu0 0.0
    %546 = vmatpush1.msra.mxu0 %v497
    %547 = vmatprep.subr.mxu0 0.0
    %548 = vmatpush1.msra.mxu0 %v496
    %549 = vmatprep.subr.mxu0 0.0
    %550 = vmatpush1.msra.mxu0 %v495
    %551 = vmatprep.subr.mxu0 0.0
    %552 = vmatpush1.msra.mxu0 %v494
    %553 = vmatprep.subr.mxu0 0.0
    %554 = vmatpush1.msra.mxu0 %v493
    %555 = vmatprep.subr.mxu0 0.0
    %556 = vmatpush1.msra.mxu0 %v492
    %557 = vmatprep.subr.mxu0 0.0
    %558 = vmatpush1.msra.mxu0 %v491
    %559 = vmatprep.subr.mxu0 0.0
    %560 = vmatpush1.msra.mxu0 %v490
    %561 = vmatprep.subr.mxu0 0.0
    %562 = vmatpush2.msra.mxu0 %v521
    %563 = vmatprep.subr.mxu0 0.0
    %564 = vmatpush2.msra.mxu0 %v520
    %565 = vmatprep.subr.mxu0 0.0
    %566 = vmatpush2.msra.mxu0 %v519
    %567 = vmatprep.subr.mxu0 0.0
    %568 = vmatpush2.msra.mxu0 %v518
    %569 = vmatprep.subr.mxu0 0.0
    %570 = vmatpush2.msra.mxu0 %v517
    %571 = vmatprep.subr.mxu0 0.0
    %572 = vmatpush2.msra.mxu0 %v516
    %573 = vmatprep.subr.mxu0 0.0
    %574 = vmatpush2.msra.mxu0 %v515
    %575 = vmatprep.subr.mxu0 0.0
    %576 = vmatpush2.msra.mxu0 %v514
    %577 = vmatprep.subr.mxu0 0.0
    %578 = vmatpush2.msra.mxu0 %v513
    %579 = vmatprep.subr.mxu0 0.0
    %580 = vmatpush2.msra.mxu0 %v512
    %581 = vmatprep.subr.mxu0 0.0
    %582 = vmatpush2.msra.mxu0 %v511
    %583 = vmatprep.subr.mxu0 0.0
    %584 = vmatpush2.msra.mxu0 %v510
    %585 = vmatprep.subr.mxu0 0.0
    %586 = vmatpush2.msra.mxu0 %v509
    %587 = vmatprep.subr.mxu0 0.0
    %588 = vmatpush2.msra.mxu0 %v508
    %589 = vmatprep.subr.mxu0 0.0
    %590 = vmatpush2.msra.mxu0 %v507
    %591 = vmatprep.subr.mxu0 0.0
    %592 = vmatpush2.msra.mxu0 %v506
    %593 = vmatprep.mubr.f32.mxu0 %v79
    %594 = vmatmul.mubr.f32.gmra.mxu0 %v414
    %v595 = vpop.f32.mrf.mxu0
    %v596 = vadd.f32 %v527, %v595
    %v597 = vpop.f32.mrf.mxu0
    %598 = vmatprep.mubr.f32.mxu0 %v80
    %599 = vmatmul.mubr.f32.gmra.mxu0 %v487
    %v600 = vpop.f32.mrf.mxu0
    %v601 = vadd.f32 %v527, %v600
    %v602 = vpop.f32.mrf.mxu0
    %603 = vdwg.mxu0
    %v604 = vtanh.pop %v596
    %v605 = vtanh.pop %v601
    %606 = vst [vmem:[#allocation10] sm:$0xff] %v604
    %607 = vst [vmem:[#allocation10 + $0x8] sm:$0xff] %v605
    // Predicated region
    $region42: #{tpu_custom_call.1} parent=1 // pred_check
      _
    $region43: #{tpu_custom_call.1} parent=1 // pred_check_branch
      %609 = sbr.rel (0) target = $region45
    $region44: #{tpu_custom_call.1} parent=1 // pred_region
      %s611 = ssub.s32 256, 256
      %612 = vsyncadd [#allocation4], %s611
      %s613 = sshll.u32 [#allocation10], 4
      %s614 = int_to_ptr.vmem [resolvable:$true] %s613
      %619 = dma.vmem_to_hbm [thread:$0]  %s614, 256, %s6, [#allocation4], 128, 128, 8
    $region45: #{tpu_custom_call.1} parent=1 // pred_fallthru
      _
    // Predicated region
    $region46: #{tpu_custom_call.1} parent=1 // pred_check
      _
    $region47: #{tpu_custom_call.1} parent=1 // pred_check_branch
      %621 = sbr.rel (0) target = $region49
    $region48: #{tpu_custom_call.1} parent=1 // pred_region
      %622 = dma.done [#allocation4], 256
    $region49: #{tpu_custom_call.1} parent=1 // pred_fallthru
      _
    %623 = vsyncpa [#allocation3], 1
    %624 = vsyncpa [#allocation6], 1
    %625 = vsyncpa [#allocation9], 1
    %626 = vsyncpa [#allocation4], 1

</llo_original>
